<compile_context>
chip_gen: v5e
topology: v5e:2x2
jax: 0.10.0
libtpu: 0.0.40
codegen_flags: <defaults>
</compile_context>

<pallas_src>
import jax
import jax.numpy as jnp
from jax.experimental import pallas as pl
from jax.experimental.pallas import tpu as pltpu


def _flat_copy_kernel(x_ref, o_ref):
    # Plain copy of one lane-dense 2D block; all reshape semantics live in the
    # wrapper (contiguous reshape == identical linear layout).
    o_ref[...] = x_ref[...]


# Minimum second-to-last-dim multiple for a non-full block, per element size.
_SUBLANE_MULTIPLE = {1: 32, 2: 16, 4: 8, 8: 8}

# Keep both v7x TensorCores busy and amortize pipeline warmup.
_MIN_GRID_STEPS = 8


def _chip_budget():
    """Return (per-block byte budget, vmem_limit_bytes) per TPU generation."""
    kind = ""
    try:
        kind = jax.devices()[0].device_kind.lower()
    except Exception:
        pass
    if "v7" in kind:
        # 64 MiB VMEM, 3.2 TB/s HBM: 8 MiB blocks -> 32 MiB resident (in+out, 2 bufs).
        return 8 * 1024 * 1024, 48 << 20
    if "v5" in kind:
        # v5e default scoped VMEM is 16 MiB: 2 MiB blocks -> 8 MiB resident.
        return 2 * 1024 * 1024, 32 << 20
    # v6e / unknown: 4 MiB blocks -> 16 MiB resident (85%+ of HBM roofline measured).
    return 4 * 1024 * 1024, 32 << 20


def _pallas_flat_copy(x_flat_2d):
    """Tiled lane-dense copy of a (rows, lanes) array, lanes % 128 == 0."""
    rows, lanes = x_flat_2d.shape
    itemsize = jnp.dtype(x_flat_2d.dtype).itemsize
    sub = _SUBLANE_MULTIPLE.get(itemsize, 8)

    target_bytes, vmem_limit = _chip_budget()
    max_rows = max(sub, ((target_bytes // (lanes * itemsize)) // sub) * sub)

    # Cap block_rows so the grid has >= _MIN_GRID_STEPS steps when the array is
    # big enough (v7x megacore sharding + pipeline amortization).
    desired = max_rows
    if rows // _MIN_GRID_STEPS >= sub:
        desired = min(desired, ((rows // _MIN_GRID_STEPS) // sub) * sub)

    if sub <= desired < rows:
        block_rows = desired       # multiple of `sub`; ragged tail block is masked
    else:
        block_rows = rows          # small array: single full-dim block (always legal)

    grid = (pl.cdiv(rows, block_rows),)

    return pl.pallas_call(
        _flat_copy_kernel,
        out_shape=jax.ShapeDtypeStruct((rows, lanes), x_flat_2d.dtype),
        grid=grid,
        in_specs=[pl.BlockSpec((block_rows, lanes), lambda i: (i, 0))],
        out_specs=pl.BlockSpec((block_rows, lanes), lambda i: (i, 0)),
        compiler_params=pltpu.CompilerParams(
            dimension_semantics=("parallel",),
            vmem_limit_bytes=vmem_limit,
        ),
        cost_estimate=pl.CostEstimate(
            flops=0,
            transcendentals=0,
            bytes_accessed=2 * rows * lanes * itemsize,
        ),
    )(x_flat_2d)


def shaper_forward(x, channels=8, to_groupy=False, materialize=True):
    """Pallas/JAX equivalent of shaper.forward.

    materialize=False: zero-copy (metadata-only) reshape -- the optimal answer
                       (wrap in lax.optimization_barrier if a fusion boundary
                       is all that is needed).
    materialize=True : materialized copy via a lane-dense Pallas flat-copy kernel.
    """
    if to_groupy:
        N, C, H, W = x.shape
        assert C % channels == 0, "C must be divisible by `channels`"
        out_shape = (N, C // channels, channels, H, W)
    else:
        N, C, G, H, W = x.shape
        out_shape = (N, C * G, H, W)

    if not materialize:
        # Contiguous row-major reshape: pure metadata, zero HBM traffic.
        return jnp.reshape(x, out_shape)

    total = x.size
    lanes = None
    for cand in (2048, 1024, 512, 256, 128):
        if total % cand == 0:
            lanes = cand
            break

    if lanes is not None:
        flat = jnp.reshape(x, (total // lanes, lanes))   # metadata only
        out_flat = _pallas_flat_copy(flat)               # the actual copy
        return jnp.reshape(out_flat, out_shape)          # metadata only

    # total not a multiple of 128: pad the flat view to a lane boundary so the
    # Pallas copy still materializes the result, then slice back.
    pad = (-total) % 128
    flat1d = jnp.pad(jnp.reshape(x, (total,)), (0, pad))
    out_flat = _pallas_flat_copy(jnp.reshape(flat1d, (-1, 128)))
    return jnp.reshape(jnp.reshape(out_flat, (-1,))[:total], out_shape)


if __name__ == "__main__":
    key = jax.random.PRNGKey(0)

    # --- default path (to_groupy=False): 5D input (N, C, G, H, W) ---
    N, C, G, H, W = 2, 4, 8, 16, 16
    x5 = jax.random.normal(key, (N, C, G, H, W), dtype=jnp.float32)
    out = jax.block_until_ready(shaper_forward(x5, channels=8, to_groupy=False))
    ref = jnp.reshape(x5, (N, C * G, H, W))
    assert out.shape == (N, C * G, H, W)
    assert jnp.array_equal(out, ref)

    # zero-copy path must match too
    out0 = jax.block_until_ready(
        shaper_forward(x5, channels=8, to_groupy=False, materialize=False))
    assert jnp.array_equal(out0, ref)

    # --- to_groupy=True path: 4D input (N, C, H, W), channels=8 ---
    x4 = jax.random.normal(jax.random.PRNGKey(1), (N, 32, H, W), dtype=jnp.float32)
    out_g = jax.block_until_ready(shaper_forward(x4, channels=8, to_groupy=True))
    ref_g = jnp.reshape(x4, (N, 32 // 8, 8, H, W))
    assert out_g.shape == (N, 4, 8, H, W)
    assert jnp.array_equal(out_g, ref_g)

    out_g0 = jax.block_until_ready(
        shaper_forward(x4, channels=8, to_groupy=True, materialize=False))
    assert jnp.array_equal(out_g0, ref_g)

    # --- shape that exercises the cdiv grid with a ragged tail block ---
    # total = 230400 -> lanes=1024, rows=225, block_rows=24, grid=(10,), tail=9 rows.
    x_r = jax.random.normal(jax.random.PRNGKey(2), (2, 4, 8, 36, 100), dtype=jnp.float32)
    out_r = jax.block_until_ready(shaper_forward(x_r, channels=8, to_groupy=False))
    assert jnp.array_equal(out_r, jnp.reshape(x_r, (2, 32, 36, 100)))

    # --- shape whose total is not a multiple of 128 (pad-and-slice path) ---
    x_p = jax.random.normal(jax.random.PRNGKey(3), (1, 2, 3, 5, 8), dtype=jnp.float32)
    out_p = jax.block_until_ready(shaper_forward(x_p, channels=8, to_groupy=False))
    assert jnp.array_equal(out_p, jnp.reshape(x_p, (1, 6, 5, 8)))

    print("KERNEL_OK")
</pallas_src>

<mosaic_0001>
module attributes {stable_mosaic.version = 11 : i64} {
  func.func @_flat_copy_kernel(%arg0: i32, %arg1: memref<8x2048xf32, #tpu.memory_space<vmem>>, %arg2: memref<8x2048xf32, #tpu.memory_space<vmem>>) attributes {dimension_semantics = [#tpu.dimension_semantics<parallel>], iteration_bounds = array<i64: 1>, scalar_prefetch = 0 : i64, scratch_operands = 0 : i64, tpu.core_type = #tpu.core_type<tc>, window_params = [{transform_indices = @transform_0, window_bounds = array<i64: 8, 2048>}, {transform_indices = @transform_1, window_bounds = array<i64: 8, 2048>}]} {
    %c0 = arith.constant 0 : index
    %c0_0 = arith.constant 0 : index
    %0 = vector.load %arg1[%c0, %c0_0] : memref<8x2048xf32, #tpu.memory_space<vmem>>, vector<8x2048xf32>
    %c0_1 = arith.constant 0 : index
    %c0_2 = arith.constant 0 : index
    %1 = vector.load %arg2[%c0_1, %c0_2] : memref<8x2048xf32, #tpu.memory_space<vmem>>, vector<8x2048xf32>
    tpu.vector_store %arg2[%c0_1, %c0_2], %0 {strides = array<i32>} : memref<8x2048xf32, #tpu.memory_space<vmem>>, vector<8x2048xf32>,
    return
  }
  func.func @transform_0(%arg0: i32) -> (i32, i32) {
    %c0_i32 = arith.constant 0 : i32
    %c0_i32_0 = arith.constant 0 : i32
    return %arg0, %c0_i32 : i32, i32
  }
  func.func @transform_1(%arg0: i32) -> (i32, i32) {
    %c0_i32 = arith.constant 0 : i32
    %c0_i32_0 = arith.constant 0 : i32
    return %arg0, %c0_i32 : i32, i32
  }
}

</mosaic_0001>

<llo_original>
// kernel: tpu_custom_call.1
$region0: #{tpu_custom_call.1}
  #allocation0 [shape = 'u32[]', space=smem, size = 0x4, offset = 0x4, fixed_abs, tag = 'smem constant byte address 0x4 - core index']
  #allocation1 [shape = 'u32[72,128]{1,0:T(1,128)}', space=vmem, size = 0x9000, scoped, tag = 'internal scratch']
  %s0 = inlined_call_operand.hbm [shape: f32[8,2048], index: 0, kind: input, shape index: {}]
  %s1 = inlined_call_operand.hbm [shape: f32[8,2048], index: 1, kind: output, shape index: {}]
  %s2 = sld [smem:[#allocation0]]
  $region18: #{tpu_custom_call.1} parent=0
    _
  %s4 = ssub.s32 1, %s2
  %s5 = scalar_select 0, %s4, %s2
  $region1: #{tpu_custom_call.1} parent=0
    #allocation2 [shape = 'u8[65536]{0}', space=vmem, size = 0x10000, scoped, tag = 'input window, operand 0, single buffered']
    #allocation3 [shape = 's32[1]{0}', space=sflag, size = 0x4, scoped, tag = 'scoped memory for tpu_custom_call.1']
    #allocation4 [shape = 's32[1]{0}', space=sflag, size = 0x4, scoped, tag = 'scoped memory for tpu_custom_call.1']
    #allocation5 [shape = 'u8[65536]{0}', space=vmem, size = 0x10000, scoped, tag = 'output window, operand 0, single buffered']
    %6 = vsyncpa [#allocation3], 0
    %7 = vsyncpa [#allocation4], 0
    // Predicated region
    $region2: #{tpu_custom_call.1} parent=1 // pred_check
      _
    $region3: #{tpu_custom_call.1} parent=1 // pred_check_branch
      %9 = sbr.rel (0) target = $region5
    $region4: #{tpu_custom_call.1} parent=1 // pred_region
      %11 = vsyncadd [#allocation3], 0
      %s13 = sshll.u32 %s0, 4
      %s14 = int_to_ptr.hbm [resolvable:$true] %s13
      %s15 = sshll.u32 [#allocation2], 4
      %s16 = int_to_ptr.vmem [resolvable:$true] %s15
      %18 = dma.hbm_to_vmem [thread:$0]  %s14, 2048, %s16, [#allocation3]
    $region5: #{tpu_custom_call.1} parent=1 // pred_fallthru
      _
    // Predicated region
    $region6: #{tpu_custom_call.1} parent=1 // pred_check
      _
    $region7: #{tpu_custom_call.1} parent=1 // pred_check_branch
      %20 = sbr.rel (0) target = $region9
    $region8: #{tpu_custom_call.1} parent=1 // pred_region
      %22 = dma.done [#allocation3], 2048
    $region9: #{tpu_custom_call.1} parent=1 // pred_fallthru
      _
    %v23 = vld [vmem:[#allocation2] sm:$0xff]
    %v24 = vld [vmem:[#allocation2 + $0x8] sm:$0xff]
    %v25 = vld [vmem:[#allocation2 + $0x10] sm:$0xff]
    %v26 = vld [vmem:[#allocation2 + $0x18] sm:$0xff]
    %v27 = vld [vmem:[#allocation2 + $0x20] sm:$0xff]
    %v28 = vld [vmem:[#allocation2 + $0x28] sm:$0xff]
    %v29 = vld [vmem:[#allocation2 + $0x30] sm:$0xff]
    %v30 = vld [vmem:[#allocation2 + $0x38] sm:$0xff]
    %v31 = vld [vmem:[#allocation2 + $0x40] sm:$0xff]
    %v32 = vld [vmem:[#allocation2 + $0x48] sm:$0xff]
    %v33 = vld [vmem:[#allocation2 + $0x50] sm:$0xff]
    %v34 = vld [vmem:[#allocation2 + $0x58] sm:$0xff]
    %v35 = vld [vmem:[#allocation2 + $0x60] sm:$0xff]
    %v36 = vld [vmem:[#allocation2 + $0x68] sm:$0xff]
    %v37 = vld [vmem:[#allocation2 + $0x70] sm:$0xff]
    %v38 = vld [vmem:[#allocation2 + $0x78] sm:$0xff]
    %39 = vst [vmem:[#allocation5] sm:$0xff] %v23
    %40 = vst [vmem:[#allocation5 + $0x8] sm:$0xff] %v24
    %41 = vst [vmem:[#allocation5 + $0x10] sm:$0xff] %v25
    %42 = vst [vmem:[#allocation5 + $0x18] sm:$0xff] %v26
    %43 = vst [vmem:[#allocation5 + $0x20] sm:$0xff] %v27
    %44 = vst [vmem:[#allocation5 + $0x28] sm:$0xff] %v28
    %45 = vst [vmem:[#allocation5 + $0x30] sm:$0xff] %v29
    %46 = vst [vmem:[#allocation5 + $0x38] sm:$0xff] %v30
    %47 = vst [vmem:[#allocation5 + $0x40] sm:$0xff] %v31
    %48 = vst [vmem:[#allocation5 + $0x48] sm:$0xff] %v32
    %49 = vst [vmem:[#allocation5 + $0x50] sm:$0xff] %v33
    %50 = vst [vmem:[#allocation5 + $0x58] sm:$0xff] %v34
    %51 = vst [vmem:[#allocation5 + $0x60] sm:$0xff] %v35
    %52 = vst [vmem:[#allocation5 + $0x68] sm:$0xff] %v36
    %53 = vst [vmem:[#allocation5 + $0x70] sm:$0xff] %v37
    %54 = vst [vmem:[#allocation5 + $0x78] sm:$0xff] %v38
    // Predicated region
    $region10: #{tpu_custom_call.1} parent=1 // pred_check
      _
    $region11: #{tpu_custom_call.1} parent=1 // pred_check_branch
      %56 = sbr.rel (0) target = $region13
    $region12: #{tpu_custom_call.1} parent=1 // pred_region
      %58 = vsyncadd [#allocation4], 0
      %s60 = sshll.u32 [#allocation5], 4
      %s61 = int_to_ptr.vmem [resolvable:$true] %s60
      %s62 = sshll.u32 %s1, 4
      %s63 = int_to_ptr.hbm [resolvable:$true] %s62
      %65 = dma.vmem_to_hbm [thread:$0]  %s61, 2048, %s63, [#allocation4]
    $region13: #{tpu_custom_call.1} parent=1 // pred_fallthru
      _
    // Predicated region
    $region14: #{tpu_custom_call.1} parent=1 // pred_check
      _
    $region15: #{tpu_custom_call.1} parent=1 // pred_check_branch
      %67 = sbr.rel (0) target = $region17
    $region16: #{tpu_custom_call.1} parent=1 // pred_region
      %69 = dma.done [#allocation4], 2048
    $region17: #{tpu_custom_call.1} parent=1 // pred_fallthru
      _
    %70 = vsyncpa [#allocation3], 1
    %71 = vsyncpa [#allocation4], 1

</llo_original>
